<compile_context>
chip_gen: v7x
topology: tpu7x:2x2x1
jax: 0.10.0
libtpu: 0.0.40
codegen_flags: <defaults>
</compile_context>

<pallas_src>
import functools

import jax
import jax.numpy as jnp
from jax.experimental import pallas as pl
from jax.experimental.pallas import tpu as pltpu


def _focal_kernel(x_ref, t_ref, sum_ref, cnt_ref, acc_s, acc_c, *,
                  num_channels, rows_total, rows_per_tile, need_row_mask):
    j = pl.program_id(1)

    @pl.when(j == 0)
    def _():
        acc_s[...] = jnp.zeros_like(acc_s)
        acc_c[...] = jnp.zeros_like(acc_c)

    t = t_ref[...]                                     # (rows, 128) int32, 255 = ignore
    valid = t != 255
    if need_row_mask:                                  # ragged last row-tile: mask OOB rows
        row = jax.lax.broadcasted_iota(jnp.int32, (rows_per_tile, 128), 0)
        valid = jnp.logical_and(valid, (j * rows_per_tile + row) < rows_total)
    tt = (t == 1).astype(jnp.float32)                  # labels are {0, 1} among valid pixels

    if num_channels == 2:
        # softmax(x)[1] == sigmoid(x1 - x0); BCE via stable softplus (1 exp + 1 log per element).
        x0 = x_ref[0].astype(jnp.float32)              # (rows, 128)
        x1 = x_ref[1].astype(jnp.float32)
        d = x1 - x0
        soft = jnp.log(1.0 + jnp.exp(-jnp.abs(d)))     # log1p(exp(-|d|)), stable
        neg_log_p = jnp.minimum(jnp.maximum(-d, 0.0) + soft, 100.0)    # -log(p),   torch clamp
        neg_log_1mp = jnp.minimum(jnp.maximum(d, 0.0) + soft, 100.0)   # -log(1-p), torch clamp
    else:
        # general-C fallback: full softmax over the (leading) channel axis, take class 1
        x = x_ref[...].astype(jnp.float32)             # (C, rows, 128)
        m = jnp.max(x, axis=0, keepdims=True)
        e = jnp.exp(x - m)
        p = e[1] / jnp.sum(e, axis=0)
        neg_log_p = jnp.minimum(-jnp.log(p), 100.0)
        neg_log_1mp = jnp.minimum(-jnp.log(1.0 - p), 100.0)

    bce = tt * neg_log_p + (1.0 - tt) * neg_log_1mp    # (rows, 128), lane-dense
    acc_s[...] += jnp.where(valid, bce, 0.0)
    acc_c[...] += valid.astype(jnp.float32)

    @pl.when(j == pl.num_programs(1) - 1)
    def _():
        sum_ref[...] = jnp.sum(acc_s[...], keepdims=True)
        cnt_ref[...] = jnp.sum(acc_c[...], keepdims=True)


def focal_loss(inputs, targets, alpha=0.8, gamma=2, smooth=1, lanes_per_tile=2048 * 128):
    """inputs: (N, C, H, W) float logits; targets: (N, H, W) integer labels in {0, 1, 255}."""
    del smooth  # unused by the torch forward as well
    N, C, H, W = inputs.shape
    HW = H * W

    # Layout-preserving reshapes only (no transpose, no float cast of targets, no f32 upcast of x).
    x = inputs.reshape(N, C, HW)
    t = targets.astype(jnp.int32).reshape(N, HW)

    # Lane axis must be a multiple of 128; pad the (rare) remainder with ignored pixels.
    hw_pad = ((HW + 127) // 128) * 128
    if hw_pad != HW:
        x = jnp.pad(x, ((0, 0), (0, 0), (0, hw_pad - HW)))
        t = jnp.pad(t, ((0, 0), (0, hw_pad - HW)), constant_values=255)

    rows_total = hw_pad // 128
    rows_per_tile = max(8, (lanes_per_tile // 128) // 8 * 8)   # multiple of 8 sublane-rows
    if rows_per_tile >= rows_total:
        rows_per_tile = rows_total                             # full extent: always a legal block
    num_j = pl.cdiv(rows_total, rows_per_tile)
    need_row_mask = (rows_total % rows_per_tile) != 0

    x = x.reshape(N, C, rows_total, 128)
    t = t.reshape(N, rows_total, 128)

    kernel = functools.partial(
        _focal_kernel,
        num_channels=C,
        rows_total=rows_total,
        rows_per_tile=rows_per_tile,
        need_row_mask=need_row_mask,
    )

    sums, cnts = pl.pallas_call(
        kernel,
        out_shape=(
            jax.ShapeDtypeStruct((N, 1, 1), jnp.float32),   # per-sample BCE sum
            jax.ShapeDtypeStruct((N, 1, 1), jnp.float32),   # per-sample valid count
        ),
        grid_spec=pltpu.PrefetchScalarGridSpec(
            num_scalar_prefetch=0,
            grid=(N, num_j),
            in_specs=[
                pl.BlockSpec((None, C, rows_per_tile, 128), lambda n, j: (n, 0, j, 0)),
                pl.BlockSpec((None, rows_per_tile, 128), lambda n, j: (n, j, 0)),
            ],
            out_specs=(
                pl.BlockSpec((None, 1, 1), lambda n, j: (n, 0, 0)),
                pl.BlockSpec((None, 1, 1), lambda n, j: (n, 0, 0)),
            ),
            scratch_shapes=[
                pltpu.VMEM((rows_per_tile, 128), jnp.float32),  # running BCE sum (lane-wise)
                pltpu.VMEM((rows_per_tile, 128), jnp.float32),  # running valid count (lane-wise)
            ],
        ),
        compiler_params=pltpu.CompilerParams(
            dimension_semantics=("parallel", "arbitrary"),
        ),
    )(x, t)

    # Tiny scalar epilogue (same semantics as the torch module).
    # Note: if every pixel is ignored the division is NaN, matching torch.
    bce = jnp.sum(sums) / jnp.sum(cnts)
    return alpha * (1.0 - jnp.exp(-bce)) ** gamma * bce


def focal_loss_ref(inputs, targets, alpha=0.8, gamma=2):
    """Pure-JAX reference mirroring the torch module (softmax + clamped binary cross entropy)."""
    p = jax.nn.softmax(inputs.astype(jnp.float32), axis=1)[:, 1].reshape(-1)
    t = targets.reshape(-1).astype(jnp.float32)
    valid = t != 255.0
    tt = jnp.where(valid, t, 0.0)
    log_p = jnp.maximum(jnp.log(p), -100.0)
    log_1mp = jnp.maximum(jnp.log(1.0 - p), -100.0)
    bce_el = -(tt * log_p + (1.0 - tt) * log_1mp)
    bce = jnp.sum(jnp.where(valid, bce_el, 0.0)) / jnp.sum(valid.astype(jnp.float32))
    return alpha * (1.0 - jnp.exp(-bce)) ** gamma * bce


if __name__ == "__main__":
    key = jax.random.PRNGKey(0)
    k_x, k_t, k_ign = jax.random.split(key, 3)

    N, C, H, W = 2, 2, 16, 16   # binary segmentation logits (channel 1 = foreground)
    x = jax.random.normal(k_x, (N, C, H, W), dtype=jnp.float32)
    t = jax.random.bernoulli(k_t, 0.5, (N, H, W)).astype(jnp.int32)
    # mark ~10% of pixels as ignore (255), like the torch forward expects
    ignore_mask = jax.random.uniform(k_ign, (N, H, W)) < 0.1
    t = jnp.where(ignore_mask, 255, t)

    out = focal_loss(x, t, alpha=0.8, gamma=2, smooth=1)
    out = jax.block_until_ready(out)

    ref = jax.block_until_ready(focal_loss_ref(x, t, alpha=0.8, gamma=2))
    assert jnp.allclose(out, ref, rtol=1e-4, atol=1e-6), (out, ref)

    print("KERNEL_OK")
</pallas_src>

<mosaic_0001>
module attributes {stable_mosaic.version = 11 : i64} {
  func.func @_focal_kernel(%arg0: i32, %arg1: i32, %arg2: memref<1x2x2x128xf32, #tpu.memory_space<vmem>>, %arg3: memref<1x2x128xi32, #tpu.memory_space<vmem>>, %arg4: memref<1x1x1xf32, #tpu.memory_space<vmem>>, %arg5: memref<1x1x1xf32, #tpu.memory_space<vmem>>, %arg6: memref<2x128xf32, #tpu.memory_space<vmem>>, %arg7: memref<2x128xf32, #tpu.memory_space<vmem>>) attributes {dimension_semantics = [#tpu.dimension_semantics<parallel>, #tpu.dimension_semantics<arbitrary>], iteration_bounds = array<i64: 2, 1>, scalar_prefetch = 0 : i64, scratch_operands = 2 : i64, tpu.core_type = #tpu.core_type<tc>, window_params = [{transform_indices = @transform_0, window_bounds = array<i64: 1, 2, 2, 128>}, {transform_indices = @transform_1, window_bounds = array<i64: 1, 2, 128>}, {transform_indices = @transform_2, window_bounds = array<i64: 1, 1, 1>}, {transform_indices = @transform_3, window_bounds = array<i64: 1, 1, 1>}]} {
    %c0_i32 = arith.constant 0 : i32
    %0 = arith.cmpi eq, %arg1, %c0_i32 : i32
    %1 = arith.extui %0 : i1 to i32
    %c0_i32_0 = arith.constant 0 : i32
    %2 = arith.cmpi ne, %1, %c0_i32_0 : i32
    scf.if %2 {
      %cst_28 = arith.constant 0.000000e+00 : f32
      %53 = vector.broadcast %cst_28 : f32 to vector<2x128xf32>
      %c0_29 = arith.constant 0 : index
      %c0_30 = arith.constant 0 : index
      %54 = vector.load %arg6[%c0_29, %c0_30] : memref<2x128xf32, #tpu.memory_space<vmem>>, vector<2x128xf32>
      tpu.vector_store %arg6[%c0_29, %c0_30], %53 {strides = array<i32>} : memref<2x128xf32, #tpu.memory_space<vmem>>, vector<2x128xf32>,
      %cst_31 = arith.constant 0.000000e+00 : f32
      %55 = vector.broadcast %cst_31 : f32 to vector<2x128xf32>
      %c0_32 = arith.constant 0 : index
      %c0_33 = arith.constant 0 : index
      %56 = vector.load %arg7[%c0_32, %c0_33] : memref<2x128xf32, #tpu.memory_space<vmem>>, vector<2x128xf32>
      tpu.vector_store %arg7[%c0_32, %c0_33], %55 {strides = array<i32>} : memref<2x128xf32, #tpu.memory_space<vmem>>, vector<2x128xf32>,
    } else {
    }
    %c0 = arith.constant 0 : index
    %c0_1 = arith.constant 0 : index
    %c0_2 = arith.constant 0 : index
    %3 = vector.load %arg3[%c0, %c0_1, %c0_2] : memref<1x2x128xi32, #tpu.memory_space<vmem>>, vector<1x2x128xi32>
    %4 = vector.shape_cast %3 : vector<1x2x128xi32> to vector<2x128xi32>
    %c255_i32 = arith.constant 255 : i32
    %5 = vector.broadcast %c255_i32 : i32 to vector<2x128xi32>
    %6 = arith.cmpi ne, %4, %5 : vector<2x128xi32>
    %c1_i32 = arith.constant 1 : i32
    %7 = vector.broadcast %c1_i32 : i32 to vector<2x128xi32>
    %8 = arith.cmpi eq, %4, %7 : vector<2x128xi32>
    %9 = arith.extui %8 : vector<2x128xi1> to vector<2x128xi32>
    %10 = arith.sitofp %9 : vector<2x128xi32> to vector<2x128xf32>
    %c0_3 = arith.constant 0 : index
    %c0_4 = arith.constant 0 : index
    %c0_5 = arith.constant 0 : index
    %c0_6 = arith.constant 0 : index
    %11 = vector.load %arg2[%c0_3, %c0_4, %c0_5, %c0_6] : memref<1x2x2x128xf32, #tpu.memory_space<vmem>>, vector<1x1x2x128xf32>
    %12 = vector.shape_cast %11 : vector<1x1x2x128xf32> to vector<2x128xf32>
    %c0_7 = arith.constant 0 : index
    %c1 = arith.constant 1 : index
    %c0_8 = arith.constant 0 : index
    %c0_9 = arith.constant 0 : index
    %13 = vector.load %arg2[%c0_7, %c1, %c0_8, %c0_9] : memref<1x2x2x128xf32, #tpu.memory_space<vmem>>, vector<1x1x2x128xf32>
    %14 = vector.shape_cast %13 : vector<1x1x2x128xf32> to vector<2x128xf32>
    %15 = arith.subf %14, %12 : vector<2x128xf32>
    %16 = math.absf %15 : vector<2x128xf32>
    %cst = arith.constant 0.000000e+00 : f32
    %17 = vector.broadcast %cst : f32 to vector<2x128xf32>
    %18 = arith.subf %17, %16 : vector<2x128xf32>
    %19 = math.exp %18 : vector<2x128xf32>
    %cst_10 = arith.constant 1.000000e+00 : f32
    %20 = vector.broadcast %cst_10 : f32 to vector<2x128xf32>
    %21 = arith.addf %20, %19 : vector<2x128xf32>
    %22 = math.log %21 : vector<2x128xf32>
    %cst_11 = arith.constant 0.000000e+00 : f32
    %23 = vector.broadcast %cst_11 : f32 to vector<2x128xf32>
    %24 = arith.subf %23, %15 : vector<2x128xf32>
    %cst_12 = arith.constant 0.000000e+00 : f32
    %25 = vector.broadcast %cst_12 : f32 to vector<2x128xf32>
    %26 = arith.maximumf %24, %25 : vector<2x128xf32>
    %27 = arith.addf %26, %22 : vector<2x128xf32>
    %cst_13 = arith.constant 1.000000e+02 : f32
    %28 = vector.broadcast %cst_13 : f32 to vector<2x128xf32>
    %29 = arith.minimumf %27, %28 : vector<2x128xf32>
    %cst_14 = arith.constant 0.000000e+00 : f32
    %30 = vector.broadcast %cst_14 : f32 to vector<2x128xf32>
    %31 = arith.maximumf %15, %30 : vector<2x128xf32>
    %32 = arith.addf %31, %22 : vector<2x128xf32>
    %cst_15 = arith.constant 1.000000e+02 : f32
    %33 = vector.broadcast %cst_15 : f32 to vector<2x128xf32>
    %34 = arith.minimumf %32, %33 : vector<2x128xf32>
    %35 = arith.mulf %10, %29 : vector<2x128xf32>
    %cst_16 = arith.constant 1.000000e+00 : f32
    %36 = vector.broadcast %cst_16 : f32 to vector<2x128xf32>
    %37 = arith.subf %36, %10 : vector<2x128xf32>
    %38 = arith.mulf %37, %34 : vector<2x128xf32>
    %39 = arith.addf %35, %38 : vector<2x128xf32>
    %c0_17 = arith.constant 0 : index
    %c0_18 = arith.constant 0 : index
    %40 = vector.load %arg6[%c0_17, %c0_18] : memref<2x128xf32, #tpu.memory_space<vmem>>, vector<2x128xf32>
    %cst_19 = arith.constant 0.000000e+00 : f32
    %41 = vector.broadcast %cst_19 : f32 to vector<2x128xf32>
    %42 = arith.select %6, %39, %41 : vector<2x128xi1>, vector<2x128xf32>
    %43 = arith.addf %40, %42 : vector<2x128xf32>
    %c0_20 = arith.constant 0 : index
    %c0_21 = arith.constant 0 : index
    %44 = vector.load %arg6[%c0_20, %c0_21] : memref<2x128xf32, #tpu.memory_space<vmem>>, vector<2x128xf32>
    tpu.vector_store %arg6[%c0_20, %c0_21], %43 {strides = array<i32>} : memref<2x128xf32, #tpu.memory_space<vmem>>, vector<2x128xf32>,
    %c0_22 = arith.constant 0 : index
    %c0_23 = arith.constant 0 : index
    %45 = vector.load %arg7[%c0_22, %c0_23] : memref<2x128xf32, #tpu.memory_space<vmem>>, vector<2x128xf32>
    %46 = arith.extui %6 : vector<2x128xi1> to vector<2x128xi32>
    %47 = arith.sitofp %46 : vector<2x128xi32> to vector<2x128xf32>
    %48 = arith.addf %45, %47 : vector<2x128xf32>
    %c0_24 = arith.constant 0 : index
    %c0_25 = arith.constant 0 : index
    %49 = vector.load %arg7[%c0_24, %c0_25] : memref<2x128xf32, #tpu.memory_space<vmem>>, vector<2x128xf32>
    tpu.vector_store %arg7[%c0_24, %c0_25], %48 {strides = array<i32>} : memref<2x128xf32, #tpu.memory_space<vmem>>, vector<2x128xf32>,
    %c0_i32_26 = arith.constant 0 : i32
    %50 = arith.cmpi eq, %arg1, %c0_i32_26 : i32
    %51 = arith.extui %50 : i1 to i32
    %c0_i32_27 = arith.constant 0 : i32
    %52 = arith.cmpi ne, %51, %c0_i32_27 : i32
    scf.if %52 {
      %c0_28 = arith.constant 0 : index
      %c0_29 = arith.constant 0 : index
      %53 = vector.load %arg6[%c0_28, %c0_29] : memref<2x128xf32, #tpu.memory_space<vmem>>, vector<2x128xf32>
      %54 = vector.shape_cast %53 : vector<2x128xf32> to vector<1x2x128xf32>
      %cst_30 = arith.constant dense<0.000000e+00> : vector<1xf32>
      %55 = vector.multi_reduction <add>, %54, %cst_30 [1, 2] : vector<1x2x128xf32> to vector<1xf32>
      %56 = vector.shape_cast %55 : vector<1xf32> to vector<1x1x1xf32>
      %57 = vector.extract %56[0, 0, 0] : f32 from vector<1x1x1xf32>
      %58 = vector.broadcast %57 : f32 to vector<1x1xf32>
      %c0_31 = arith.constant 0 : index
      %c0_32 = arith.constant 0 : index
      %c0_33 = arith.constant 0 : index
      %59 = vector.load %arg4[%c0_31, %c0_32, %c0_33] : memref<1x1x1xf32, #tpu.memory_space<vmem>>, vector<1x1x1xf32>
      %60 = vector.shape_cast %59 : vector<1x1x1xf32> to vector<1x1xf32>
      %61 = vector.shape_cast %58 : vector<1x1xf32> to vector<1x1x1xf32>
      tpu.vector_store %arg4[%c0_31, %c0_32, %c0_33], %61 {strides = array<i32>} : memref<1x1x1xf32, #tpu.memory_space<vmem>>, vector<1x1x1xf32>,
      %c0_34 = arith.constant 0 : index
      %c0_35 = arith.constant 0 : index
      %62 = vector.load %arg7[%c0_34, %c0_35] : memref<2x128xf32, #tpu.memory_space<vmem>>, vector<2x128xf32>
      %63 = vector.shape_cast %62 : vector<2x128xf32> to vector<1x2x128xf32>
      %cst_36 = arith.constant dense<0.000000e+00> : vector<1xf32>
      %64 = vector.multi_reduction <add>, %63, %cst_36 [1, 2] : vector<1x2x128xf32> to vector<1xf32>
      %65 = vector.shape_cast %64 : vector<1xf32> to vector<1x1x1xf32>
      %66 = vector.extract %65[0, 0, 0] : f32 from vector<1x1x1xf32>
      %67 = vector.broadcast %66 : f32 to vector<1x1xf32>
      %c0_37 = arith.constant 0 : index
      %c0_38 = arith.constant 0 : index
      %c0_39 = arith.constant 0 : index
      %68 = vector.load %arg5[%c0_37, %c0_38, %c0_39] : memref<1x1x1xf32, #tpu.memory_space<vmem>>, vector<1x1x1xf32>
      %69 = vector.shape_cast %68 : vector<1x1x1xf32> to vector<1x1xf32>
      %70 = vector.shape_cast %67 : vector<1x1xf32> to vector<1x1x1xf32>
      tpu.vector_store %arg5[%c0_37, %c0_38, %c0_39], %70 {strides = array<i32>} : memref<1x1x1xf32, #tpu.memory_space<vmem>>, vector<1x1x1xf32>,
    } else {
    }
    return
  }
  func.func @transform_0(%arg0: i32, %arg1: i32) -> (i32, i32, i32, i32) {
    %c0_i32 = arith.constant 0 : i32
    %c0_i32_0 = arith.constant 0 : i32
    %c0_i32_1 = arith.constant 0 : i32
    return %arg0, %c0_i32, %arg1, %c0_i32_0 : i32, i32, i32, i32
  }
  func.func @transform_1(%arg0: i32, %arg1: i32) -> (i32, i32, i32) {
    %c0_i32 = arith.constant 0 : i32
    %c0_i32_0 = arith.constant 0 : i32
    return %arg0, %arg1, %c0_i32 : i32, i32, i32
  }
  func.func @transform_2(%arg0: i32, %arg1: i32) -> (i32, i32, i32) {
    %c0_i32 = arith.constant 0 : i32
    %c0_i32_0 = arith.constant 0 : i32
    %c0_i32_1 = arith.constant 0 : i32
    return %arg0, %c0_i32, %c0_i32_0 : i32, i32, i32
  }
  func.func @transform_3(%arg0: i32, %arg1: i32) -> (i32, i32, i32) {
    %c0_i32 = arith.constant 0 : i32
    %c0_i32_0 = arith.constant 0 : i32
    %c0_i32_1 = arith.constant 0 : i32
    return %arg0, %c0_i32, %c0_i32_0 : i32, i32, i32
  }
}

</mosaic_0001>

<llo_original>
// kernel: tpu_custom_call.1
$region0: #{tpu_custom_call.1}
  #allocation0 [shape = 'u32[]', space=smem, size = 0x4, offset = 0x4, fixed_abs, tag = 'smem constant byte address 0x4 - core index']
  #allocation1 [shape = 'u32[144,128]{1,0:T(1,128)}', space=vmem, size = 0x12000, scoped, tag = 'internal scratch']
  #allocation2 [shape = 'f32[2,128]{1,0:T(2,128)}', space=vmem, size = 0x400, scoped, tag = 'scratch operand']
  #allocation3 [shape = 'f32[2,128]{1,0:T(2,128)}', space=vmem, size = 0x400, scoped, tag = 'scratch operand']
  %s0 = inlined_call_operand.hbm [shape: f32[2,2,2,128], index: 0, kind: input, shape index: {}]
  %s1 = inlined_call_operand.hbm [shape: s32[2,2,128], index: 1, kind: input, shape index: {}]
  %s2 = inlined_call_operand.vmem [shape: f32[2,1,1], index: 2, kind: output, shape index: {0}]
  %s3 = inlined_call_operand.vmem [shape: f32[2,1,1], index: 3, kind: output, shape index: {1}]
  %4 = xla_tuple %s2, %s3
  %s5 = sld [smem:[#allocation0]]
  $region65: #{tpu_custom_call.1} parent=0
    _
  %s7 = ssub.s32 1, %s5
  %s8 = scalar_select 0, %s7, %s5
  $region1: #{tpu_custom_call.1} parent=0
    #allocation4 [shape = 'u8[4096]{0}', space=vmem, size = 0x1000, scoped, tag = 'input window, operand 0']
    #allocation5 [shape = 's32[2]{0}', space=sflag, size = 0x8, scoped, tag = 'scoped memory for tpu_custom_call.1']
    #allocation6 [shape = 'u8[2048]{0}', space=vmem, size = 0x800, scoped, tag = 'input window, operand 1']
    #allocation7 [shape = 's32[2]{0}', space=sflag, size = 0x8, scoped, tag = 'scoped memory for tpu_custom_call.1']
    %9 = vsyncpa [#allocation5], 0
    %s10 = scalar_lea.sflag [#allocation5], 1
    %11 = vsyncpa %s10, 0
    %12 = vsyncpa [#allocation7], 0
    %s13 = scalar_lea.sflag [#allocation7], 1
    %14 = vsyncpa %s13, 0
    loop: start=0, step=1, limit=4
    $region2: #{tpu_custom_call.1} parent=1 // loop_pre_header
      _
    $region3: #{tpu_custom_call.1} parent=1 // loop_header
      %s16 = sphi 0, %s20
      %p17 = scmp.ge.s32.totalorder %s16, 4
      %s23 = sphi 0, %s35
      %s24 = sphi 0, %s31
      %s25 = sphi 0, %s23
      %s26 = sphi 0, %s24
      %s27 = sphi 0, %s25
      %s28 = sphi 0, %s26
      %s40 = sphi 0, %s42
      %s43 = sphi 0, %s40
      %s44 = sphi 0, %s43
      %s60 = sphi 0, %s44
      %s68 = sphi 0, %s70
      %s71 = sphi 0, %s68
      %s72 = sphi 0, %s71
      %s88 = sphi 0, %s72
      %s94 = sphi 0, %s96
      %s97 = sphi 0, %s94
      %s98 = sphi 0, %s97
      %s114 = sphi 0, %s98
      %s120 = sphi 0, %s122
      %s123 = sphi 0, %s120
      %s124 = sphi 0, %s123
      %s140 = sphi 0, %s124
    $region4: #{tpu_custom_call.1} parent=1 // loop_header_branch
      %19 = sbr.rel (%p17) target = $region8
    $region5: #{tpu_custom_call.1} parent=1 // loop_body
      %s21 = ssub.s32 %s16, 1
      %s22 = ssub.s32 %s16, 2
      %s29 = sadd.s32 1, %s24
      %p30 = scmp.ge.s32.totalorder %s29, 1
      %s31 = scalar_select %p30, 0, %s29
      %s32 = sadd.s32 1, %s23
      %s33 = scalar_select %p30, %s32, %s23
      %p34 = scmp.ge.s32.totalorder %s33, 2
      %s35 = scalar_select %p34, 0, %s33
      %s36 = ssub.s32 %s23, %s35
      %s37 = ssub.s32 %s24, %s31
      %s38 = sor.u32 %s36, %s37
      %p39 = scmp.eq.s32.totalorder %s38, 0
      %s41 = sadd.s32 %s40, 1
      %s42 = scalar_select %p39, %s40, %s41
      %p45 = pneg %p39
      %p46 = scmp.eq.s32.totalorder %s16, 1
      %p47 = por %p45, %p46
      %p48 = scmp.ne.s32.totalorder %s40, %s43
      %p49 = scmp.eq.s32.totalorder %s16, 0
      %p50 = por %p48, %p49
      %p51 = scmp.ne.s32.totalorder %s40, %s43
      %p52 = scmp.eq.s32.totalorder %s21, 1
      %p53 = por %p51, %p52
      %p54 = scmp.ne.s32.totalorder %s43, %s44
      %p55 = scmp.eq.s32.totalorder %s21, 0
      %p56 = por %p54, %p55
      %p57 = scmp.ne.s32.totalorder %s43, %s44
      %p58 = scmp.eq.s32.totalorder %s22, 1
      %p59 = por %p57, %p58
      %p61 = scmp.ne.s32.totalorder %s44, %s60
      %p62 = scmp.eq.s32.totalorder %s22, 0
      %p63 = por %p61, %p62
      %s64 = ssub.s32 %s23, %s35
      %s65 = ssub.s32 %s24, %s31
      %s66 = sor.u32 %s64, %s65
      %p67 = scmp.eq.s32.totalorder %s66, 0
      %s69 = sadd.s32 %s68, 1
      %s70 = scalar_select %p67, %s68, %s69
      %p73 = pneg %p67
      %p74 = scmp.eq.s32.totalorder %s16, 1
      %p75 = por %p73, %p74
      %p76 = scmp.ne.s32.totalorder %s68, %s71
      %p77 = scmp.eq.s32.totalorder %s16, 0
      %p78 = por %p76, %p77
      %p79 = scmp.ne.s32.totalorder %s68, %s71
      %p80 = scmp.eq.s32.totalorder %s21, 1
      %p81 = por %p79, %p80
      %p82 = scmp.ne.s32.totalorder %s71, %s72
      %p83 = scmp.eq.s32.totalorder %s21, 0
      %p84 = por %p82, %p83
      %p85 = scmp.ne.s32.totalorder %s71, %s72
      %p86 = scmp.eq.s32.totalorder %s22, 1
      %p87 = por %p85, %p86
      %p89 = scmp.ne.s32.totalorder %s72, %s88
      %p90 = scmp.eq.s32.totalorder %s22, 0
      %p91 = por %p89, %p90
      %s92 = ssub.s32 %s23, %s35
      %p93 = scmp.eq.s32.totalorder %s92, 0
      %s95 = sadd.s32 %s94, 1
      %s96 = scalar_select %p93, %s94, %s95
      %p99 = pneg %p93
      %p100 = scmp.eq.s32.totalorder %s16, 1
      %p101 = por %p99, %p100
      %p102 = scmp.ne.s32.totalorder %s94, %s97
      %p103 = scmp.eq.s32.totalorder %s16, 0
      %p104 = por %p102, %p103
      %p105 = scmp.ne.s32.totalorder %s94, %s97
      %p106 = scmp.eq.s32.totalorder %s21, 1
      %p107 = por %p105, %p106
      %p108 = scmp.ne.s32.totalorder %s97, %s98
      %p109 = scmp.eq.s32.totalorder %s21, 0
      %p110 = por %p108, %p109
      %p111 = scmp.ne.s32.totalorder %s97, %s98
      %p112 = scmp.eq.s32.totalorder %s22, 1
      %p113 = por %p111, %p112
      %p115 = scmp.ne.s32.totalorder %s98, %s114
      %p116 = scmp.eq.s32.totalorder %s22, 0
      %p117 = por %p115, %p116
      %s118 = ssub.s32 %s23, %s35
      %p119 = scmp.eq.s32.totalorder %s118, 0
      %s121 = sadd.s32 %s120, 1
      %s122 = scalar_select %p119, %s120, %s121
      %p125 = pneg %p119
      %p126 = scmp.eq.s32.totalorder %s16, 1
      %p127 = por %p125, %p126
      %p128 = scmp.ne.s32.totalorder %s120, %s123
      %p129 = scmp.eq.s32.totalorder %s16, 0
      %p130 = por %p128, %p129
      %p131 = scmp.ne.s32.totalorder %s120, %s123
      %p132 = scmp.eq.s32.totalorder %s21, 1
      %p133 = por %p131, %p132
      %p134 = scmp.ne.s32.totalorder %s123, %s124
      %p135 = scmp.eq.s32.totalorder %s21, 0
      %p136 = por %p134, %p135
      %p137 = scmp.ne.s32.totalorder %s123, %s124
      %p138 = scmp.eq.s32.totalorder %s22, 1
      %p139 = por %p137, %p138
      %p141 = scmp.ne.s32.totalorder %s124, %s140
      %p142 = scmp.eq.s32.totalorder %s22, 0
      %p143 = por %p141, %p142
      %p144 = scmp.le.s32.totalorder 1, %s16
      %p145 = scmp.lt.s32.totalorder %s16, 3
      %p146 = pnand %p144, %p145
      %p147 = pneg %p146
      // Predicated region
      $region9: #{tpu_custom_call.1} parent=5 // pred_check
        _
      $region10: #{tpu_custom_call.1} parent=5 // pred_check_branch
        %149 = sbr.rel (%p146) target = $region12
      $region11: #{tpu_custom_call.1} parent=5 // pred_region
        %s150 = ssub.s32 %s16, 1
      $region12: #{tpu_custom_call.1} parent=5 // pred_fallthru
        _
      %p151 = scmp.lt.s32.totalorder %s16, 2
      // Predicated region
      $region13: #{tpu_custom_call.1} parent=5 // pred_check
        %p152 = pneg %p151
      $region14: #{tpu_custom_call.1} parent=5 // pred_check_branch
        %154 = sbr.rel (%p152) target = $region16
      $region15: #{tpu_custom_call.1} parent=5 // pred_region
        // Predicated region
        $region17: #{tpu_custom_call.1} parent=15 // pred_check
          %p155 = pneg %p50
        $region18: #{tpu_custom_call.1} parent=15 // pred_check_branch
          %157 = sbr.rel (%p155) target = $region20
        $region19: #{tpu_custom_call.1} parent=15 // pred_region
          %s158 = sand.u32 %s40, 1
          %s159 = scalar_lea.sflag [#allocation5], %s158
          %s160 = sand.u32 %s40, 1
          %s161 = smul.addr %s160, 4
          %s162 = scalar_lea.vmem [#allocation4], %s161
          %s164 = ssub.s32 64, 64
          %165 = vsyncadd %s159, %s164
          %s166 = smul.addr %s23, 2
          %s167 = sadd.s32 %s24, %s166
          %s168 = smul.addr %s167, 32
          %s169 = scalar_lea.hbm %s0, %s168
          %s170 = sshll.u32 %s162, 4
          %s171 = int_to_ptr.vmem [resolvable:$true] %s170
          %176 = dma.hbm_to_vmem [thread:$0]  %s169, 64, %s171, %s159, 32, 32, 2
        $region20: #{tpu_custom_call.1} parent=15 // pred_fallthru
          _
        // Predicated region
        $region21: #{tpu_custom_call.1} parent=15 // pred_check
          %p177 = pneg %p78
        $region22: #{tpu_custom_call.1} parent=15 // pred_check_branch
          %179 = sbr.rel (%p177) target = $region24
        $region23: #{tpu_custom_call.1} parent=15 // pred_region
          %s180 = sand.u32 %s68, 1
          %s181 = scalar_lea.sflag [#allocation7], %s180
          %s182 = sand.u32 %s68, 1
          %s183 = smul.addr %s182, 2
          %s184 = scalar_lea.vmem [#allocation6], %s183
          %s186 = ssub.s32 32, 32
          %187 = vsyncadd %s181, %s186
          %s188 = sadd.s32 %s24, %s23
          %s189 = smul.addr %s188, 32
          %s190 = scalar_lea.hbm %s1, %s189
          %s192 = sshll.u32 %s184, 4
          %s193 = int_to_ptr.vmem [resolvable:$true] %s192
          %195 = dma.hbm_to_vmem [thread:$0]  %s190, 32, %s193, %s181
        $region24: #{tpu_custom_call.1} parent=15 // pred_fallthru
          _
      $region16: #{tpu_custom_call.1} parent=5 // pred_fallthru
        _
      %p196 = scmp.le.s32.totalorder 1, %s16
      %p197 = scmp.lt.s32.totalorder %s16, 3
      %p198 = pnand %p196, %p197
      %p199 = pneg %p198
      // Predicated region
      $region25: #{tpu_custom_call.1} parent=5 // pred_check
        _
      $region26: #{tpu_custom_call.1} parent=5 // pred_check_branch
        %201 = sbr.rel (%p198) target = $region28
      $region27: #{tpu_custom_call.1} parent=5 // pred_region
        %s202 = ssub.s32 %s16, 1
        %s203 = sand.u32 %s43, 1
        %s204 = scalar_lea.sflag [#allocation5], %s203
        %s205 = sand.u32 %s43, 1
        %s206 = smul.addr %s205, 4
        %s207 = scalar_lea.vmem [#allocation4], %s206
        // Predicated region
        $region29: #{tpu_custom_call.1} parent=27 // pred_check
          %p208 = pneg %p56
        $region30: #{tpu_custom_call.1} parent=27 // pred_check_branch
          %210 = sbr.rel (%p208) target = $region32
        $region31: #{tpu_custom_call.1} parent=27 // pred_region
          %211 = dma.done %s204, 64
        $region32: #{tpu_custom_call.1} parent=27 // pred_fallthru
          _
        %s212 = sand.u32 %s71, 1
        %s213 = scalar_lea.sflag [#allocation7], %s212
        %s214 = sand.u32 %s71, 1
        %s215 = smul.addr %s214, 2
        %s216 = scalar_lea.vmem [#allocation6], %s215
        // Predicated region
        $region33: #{tpu_custom_call.1} parent=27 // pred_check
          %p217 = pneg %p84
        $region34: #{tpu_custom_call.1} parent=27 // pred_check_branch
          %219 = sbr.rel (%p217) target = $region36
        $region35: #{tpu_custom_call.1} parent=27 // pred_region
          %220 = dma.done %s213, 32
        $region36: #{tpu_custom_call.1} parent=27 // pred_fallthru
          _
        %s221 = sand.u32 %s43, 1
        %s222 = scalar_lea.sflag [#allocation5], %s221
        %s223 = sand.u32 %s43, 1
        %s224 = smul.addr %s223, 4
        %s225 = scalar_lea.vmem [#allocation4], %s224
        %p226 = pneg %p56
        %p227 = pneg %p53
        %s228 = sand.u32 %s71, 1
        %s229 = scalar_lea.sflag [#allocation7], %s228
        %s230 = sand.u32 %s71, 1
        %s231 = smul.addr %s230, 2
        %s232 = scalar_lea.vmem [#allocation6], %s231
        %p233 = pneg %p84
        %p234 = pneg %p81
        %p235 = pneg %p110
        %p236 = pneg %p107
        %p237 = scmp.lt.s32.totalorder %s25, 1
        %s238 = scalar_select %p237, %s25, 1
        %s239 = scalar_lea.vmem %s2, %s238
        %p240 = pneg %p136
        %p241 = pneg %p133
        %p242 = scmp.lt.s32.totalorder %s25, 1
        %s243 = scalar_select %p242, %s25, 1
        %s244 = scalar_lea.vmem %s3, %s243
        %p245 = scmp.lt.s32.totalorder %s25, 1
        %s246 = scalar_select %p245, %s25, 1
        %s247 = scalar_lea.vmem %s2, %s246
        %p248 = scmp.lt.s32.totalorder %s25, 1
        %s249 = scalar_select %p248, %s25, 1
        %s250 = scalar_lea.vmem %s3, %s249
        %p251 = scmp.eq.s32.totalorder %s26, 0
        // Predicated region
        $region37: #{tpu_custom_call.1} parent=27 // pred_check
          %p252 = pneg %p251
        $region38: #{tpu_custom_call.1} parent=27 // pred_check_branch
          %254 = sbr.rel (%p252) target = $region40
        $region39: #{tpu_custom_call.1} parent=27 // pred_region
          %255 = vst [vmem:[#allocation2] sm:$0x3] 0.0
          %256 = vst [vmem:[#allocation3] sm:$0x3] 0.0
        $region40: #{tpu_custom_call.1} parent=27 // pred_fallthru
          _
        %v257 = vld [vmem:[%s216] sm:$0x3]
        %vm258 = vcmp.ne.s32.totalorder %v257, 255
        %vm259 = vcmp.eq.s32.totalorder %v257, 1
        %v260 = vsel %vm259, 1, 0
        %v261 = vcvt.s32.f32 %v260
        %v262 = vld [vmem:[%s207] sm:$0x3]
        %s263 = scalar_lea.vmem %s207, 2 [#allocation4]
        %v264 = vld [vmem:[%s263] sm:$0x3]
        %v265 = vsub.f32 %v264, %v262
        %v266 = vand.u32 2147483647, %v265
        %v267 = vsub.f32 0.0, %v266
        %v268 = vmul.f32 %v267, 1.442695
        %v269 = vpow.pop %v268
        %v270 = vadd.f32 %v269, 1.0
        %v271 = vlog2.pop %v270
        %v272 = vmul.f32 %v271, 0.6931472
        %v273 = vsub.f32 0.0, %v265
        %v274 = vmax.f32 %v273, 0.0
        %v275 = vadd.f32 %v274, %v272
        %v276 = vmin.f32 %v275, 100.0
        %v277 = vmax.f32 %v265, 0.0
        %v278 = vadd.f32 %v277, %v272
        %v279 = vmin.f32 %v278, 100.0
        %v280 = vmul.f32 %v261, %v276
        %v281 = vsub.f32 1.0, %v261
        %v282 = vmul.f32 %v281, %v279
        %v283 = vadd.f32 %v280, %v282
        %v284 = vld [vmem:[#allocation2] sm:$0x3]
        %v285 = vsel %vm258, %v283, 0.0
        %v286 = vadd.f32 %v284, %v285
        %287 = vst [vmem:[#allocation2] sm:$0x3] %v286
        %v288 = vld [vmem:[#allocation3] sm:$0x3]
        %v289 = vsel %vm258, 1, 0
        %v290 = vcvt.s32.f32 %v289
        %v291 = vadd.f32 %v288, %v290
        %292 = vst [vmem:[#allocation3] sm:$0x3] %v291
        // Predicated region
        $region41: #{tpu_custom_call.1} parent=27 // pred_check
          %p293 = pneg %p251
        $region42: #{tpu_custom_call.1} parent=27 // pred_check_branch
          %295 = sbr.rel (%p293) target = $region44
        $region43: #{tpu_custom_call.1} parent=27 // pred_region
          %v296 = vld [vmem:[#allocation2] sm:$0x3]
          %vm297 = vcmask 1041408
          %v298 = vsel %vm297, %v296, 0.0
          %299 = vadd.xlane.f32.xlu0 %v298
          %v300 = vpop.xlane.xlu0 %299
          %v301 = vrot.slane %v300, 4
          %v302 = vadd.f32 %v300, %v301
          %v303 = vrot.slane %v302, 2
          %v304 = vadd.f32 %v302, %v303
          %v305 = vrot.slane %v304, 1
          %v306 = vadd.f32 %v304, %v305
          %s307 = vtos %v306
          %v308 = vstv %s307
          %vm309 = vcmask 0
          %310 = vst.msk [vmem:[%s247] sm:$0x1] %vm309, %v308
          %v311 = vld [vmem:[#allocation3] sm:$0x3]
          %v312 = vsel %vm297, %v311, 0.0
          %313 = vadd.xlane.f32.xlu0 %v312
          %v314 = vpop.xlane.xlu0 %313
          %v315 = vrot.slane %v314, 4
          %v316 = vadd.f32 %v314, %v315
          %v317 = vrot.slane %v316, 2
          %v318 = vadd.f32 %v316, %v317
          %v319 = vrot.slane %v318, 1
          %v320 = vadd.f32 %v318, %v319
          %s321 = vtos %v320
          %v322 = vstv %s321
          %323 = vst.msk [vmem:[%s250] sm:$0x1] %vm309, %v322
        $region44: #{tpu_custom_call.1} parent=27 // pred_fallthru
          _
        %p324 = scmp.lt.s32.totalorder %s25, 1
        %s325 = scalar_select %p324, %s25, 1
        %s326 = scalar_lea.vmem %s2, %s325
        %p327 = scmp.lt.s32.totalorder %s25, 1
        %s328 = scalar_select %p327, %s25, 1
        %s329 = scalar_lea.vmem %s3, %s328
        // Predicated region
        $region45: #{tpu_custom_call.1} parent=27 // pred_check
          %p330 = pneg %p107
        $region46: #{tpu_custom_call.1} parent=27 // pred_check_branch
          %332 = sbr.rel (%p330) target = $region48
        $region47: #{tpu_custom_call.1} parent=27 // pred_region
          _
        $region48: #{tpu_custom_call.1} parent=27 // pred_fallthru
          _
        // Predicated region
        $region49: #{tpu_custom_call.1} parent=27 // pred_check
          %p333 = pneg %p133
        $region50: #{tpu_custom_call.1} parent=27 // pred_check_branch
          %335 = sbr.rel (%p333) target = $region52
        $region51: #{tpu_custom_call.1} parent=27 // pred_region
          _
        $region52: #{tpu_custom_call.1} parent=27 // pred_fallthru
          _
      $region28: #{tpu_custom_call.1} parent=5 // pred_fallthru
        _
      %p336 = scmp.le.s32.totalorder 2, %s16
      // Predicated region
      $region53: #{tpu_custom_call.1} parent=5 // pred_check
        %p337 = pneg %p336
      $region54: #{tpu_custom_call.1} parent=5 // pred_check_branch
        %339 = sbr.rel (%p337) target = $region56
      $region55: #{tpu_custom_call.1} parent=5 // pred_region
        %s340 = ssub.s32 %s16, 2
        // Predicated region
        $region57: #{tpu_custom_call.1} parent=55 // pred_check
          %p341 = pneg %p113
        $region58: #{tpu_custom_call.1} parent=55 // pred_check_branch
          %343 = sbr.rel (%p341) target = $region60
        $region59: #{tpu_custom_call.1} parent=55 // pred_region
          %p344 = scmp.lt.s32.totalorder %s27, 1
          %s345 = scalar_select %p344, %s27, 1
          %s346 = scalar_lea.vmem %s2, %s345
        $region60: #{tpu_custom_call.1} parent=55 // pred_fallthru
          _
        // Predicated region
        $region61: #{tpu_custom_call.1} parent=55 // pred_check
          %p347 = pneg %p139
        $region62: #{tpu_custom_call.1} parent=55 // pred_check_branch
          %349 = sbr.rel (%p347) target = $region64
        $region63: #{tpu_custom_call.1} parent=55 // pred_region
          %p350 = scmp.lt.s32.totalorder %s27, 1
          %s351 = scalar_select %p350, %s27, 1
          %s352 = scalar_lea.vmem %s3, %s351
        $region64: #{tpu_custom_call.1} parent=55 // pred_fallthru
          _
      $region56: #{tpu_custom_call.1} parent=5 // pred_fallthru
        _
    $region6: #{tpu_custom_call.1} parent=1 // loop_footer
      %s20 = sadd.s32 1, %s16
    $region7: #{tpu_custom_call.1} parent=1 // loop_footer_branch
      %15 = sbr.rel target = $region3
    $region8: #{tpu_custom_call.1} parent=1 // loop_exit
      _
    %353 = vsyncpa [#allocation5], 1
    %s354 = scalar_lea.sflag [#allocation5], 1
    %355 = vsyncpa %s354, 1
    %356 = vsyncpa [#allocation7], 1
    %s357 = scalar_lea.sflag [#allocation7], 1
    %358 = vsyncpa %s357, 1

</llo_original>
